<compile_context>
chip_gen: v7x
topology: tpu7x:2x2x1
jax: 0.10.0
libtpu: 0.0.40
codegen_flags: <defaults>
</compile_context>

<pallas_src>
import jax
import jax.numpy as jnp
from jax.experimental import pallas as pl
from jax.experimental.pallas import tpu as pltpu


def _make_linear_add_relu_kernel(K: int, N: int):
    """relu(x @ W + b + other) in a transposed, lane-dense layout.

    Kernel refs:
      xT_ref    : (K, tm) VMEM  -- tile of x^T, M rides the 128-lane axis
      w_ref     : (K, N)  SMEM  -- weight scalars
      b_ref     : (N,)    SMEM
      other_ref : (N,)    SMEM
      oT_ref    : (N, tm) VMEM  -- tile of out^T (lane-dense stores)

    K=3 contraction is an unrolled VPU broadcast-FMA (scalar * vreg); the MXU
    is never touched for this 3-deep contraction.
    """
    def kernel(xT_ref, w_ref, b_ref, other_ref, oT_ref):
        xs = [xT_ref[k:k + 1, :] for k in range(K)]      # K lane-dense rows
        for n in range(N):                               # static unroll
            bias_n = b_ref[n] + other_ref[n]             # scalar add (SMEM)
            row = xs[0] * w_ref[0, n]
            for k in range(1, K):
                row = row + xs[k] * w_ref[k, n]
            oT_ref[n:n + 1, :] = jnp.maximum(row + bias_n, 0.0)
    return kernel


def linear_add_relu(x, w, b, other, *, tm=2048):
    """Computes relu(x @ w + b + other).

    x: (M, K), w: (K, N), b: (N,), other: (N,).  Returns (M, N).
    """
    M, K = x.shape
    Kw, N = w.shape
    assert K == Kw and b.shape == (N,) and other.shape == (N,)
    kernel = _make_linear_add_relu_kernel(K, N)

    # Lane-dense layout plumbing: transpose so M is the last (lane) axis of
    # both the streamed input tile (K, tm) and the output tile (N, tm).
    xT = x.T                                     # (K, M)

    smem = pl.BlockSpec(memory_space=pltpu.MemorySpace.SMEM)

    if M <= tm:
        # Tiny-M path (module shape M=5): one full-extent block, no grid /
        # pipeline machinery.  pallas_call fixed cost dominates here anyway;
        # if this op sits inside a larger jitted model, fuse it there instead.
        outT = pl.pallas_call(
            kernel,
            out_shape=jax.ShapeDtypeStruct((N, M), x.dtype),
            in_specs=[
                pl.BlockSpec(memory_space=pltpu.MemorySpace.VMEM),
                smem, smem, smem,
            ],
            out_specs=pl.BlockSpec(memory_space=pltpu.MemorySpace.VMEM),
        )(xT, w, b, other)
        return outT.T

    # Scaled-M path: stream lane-dense tiles of x^T / out^T, weights & biases
    # resident in SMEM.  grid = cdiv(M, tm): the ragged edge block is masked
    # by Pallas on writeback, so no pad / slice passes over HBM are needed.
    # (Garbage lanes in the padded edge only feed elementwise ops and are
    # never written back, so they cannot contaminate valid outputs.)
    grid = (pl.cdiv(M, tm),)
    outT = pl.pallas_call(
        kernel,
        out_shape=jax.ShapeDtypeStruct((N, M), x.dtype),
        grid=grid,
        in_specs=[
            pl.BlockSpec((K, tm), lambda i: (0, i)),   # streamed x^T tile
            smem, smem, smem,                          # resident scalars
        ],
        out_specs=pl.BlockSpec((N, tm), lambda i: (0, i)),
        compiler_params=pltpu.CompilerParams(
            # v7x: two TensorCores split the row tiles; measured no-op on
            # v5e/v6e where the only levers are tile size + lane density.
            dimension_semantics=("parallel",),
        ),
    )(xT, w, b, other)
    return outT.T


if __name__ == "__main__":
    key = jax.random.PRNGKey(0)
    k_x, k_w, k_b, k_o = jax.random.split(key, 4)

    in_features, out_features = 3, 4
    M = 5

    # Deterministic parameter init (mimics nn.Linear's U(-1/sqrt(K), 1/sqrt(K)))
    bound = 1.0 / jnp.sqrt(jnp.float32(in_features))
    w = jax.random.uniform(k_w, (in_features, out_features), jnp.float32,
                           minval=-bound, maxval=bound)
    b = jax.random.uniform(k_b, (out_features,), jnp.float32,
                           minval=-bound, maxval=bound)

    # Module-level `other = torch.randn(4)` and input x1 = torch.randn(5, 3)
    other = jax.random.normal(k_o, (out_features,), jnp.float32)
    x1 = jax.random.normal(k_x, (M, in_features), jnp.float32)

    # Module-shaped case (M=5): grid-less single-block kernel.
    out = linear_add_relu(x1, w, b, other)
    jax.block_until_ready(out)
    ref = jnp.maximum(x1 @ w + b + other, 0.0)
    assert out.shape == (M, out_features)
    assert jnp.allclose(out, ref, atol=1e-5, rtol=1e-5)

    # Scaled-M streaming path: ragged edge (M not a multiple of tm), no pad/slice.
    M_big = 4100
    x_big = jax.random.normal(jax.random.PRNGKey(1), (M_big, in_features),
                              jnp.float32)
    out_big = linear_add_relu(x_big, w, b, other, tm=2048)
    jax.block_until_ready(out_big)
    ref_big = jnp.maximum(x_big @ w + b + other, 0.0)
    assert out_big.shape == (M_big, out_features)
    assert jnp.allclose(out_big, ref_big, atol=1e-5, rtol=1e-5)

    print("KERNEL_OK")
</pallas_src>

<mosaic_0001>
module attributes {stable_mosaic.version = 11 : i64} {
  func.func @kernel(%arg0: memref<3x5xf32, #tpu.memory_space<vmem>>, %arg1: memref<3x4xf32, #tpu.memory_space<smem>>, %arg2: memref<4xf32, #tpu.memory_space<smem>>, %arg3: memref<4xf32, #tpu.memory_space<smem>>, %arg4: memref<4x5xf32, #tpu.memory_space<vmem>>) attributes {dimension_semantics = [], scalar_prefetch = 0 : i64, scratch_operands = 0 : i64, tpu.core_type = #tpu.core_type<tc>} {
    %c0 = arith.constant 0 : index
    %c0_0 = arith.constant 0 : index
    %0 = vector.load %arg0[%c0, %c0_0] : memref<3x5xf32, #tpu.memory_space<vmem>>, vector<1x5xf32>
    %c1 = arith.constant 1 : index
    %c0_1 = arith.constant 0 : index
    %1 = vector.load %arg0[%c1, %c0_1] : memref<3x5xf32, #tpu.memory_space<vmem>>, vector<1x5xf32>
    %c2 = arith.constant 2 : index
    %c0_2 = arith.constant 0 : index
    %2 = vector.load %arg0[%c2, %c0_2] : memref<3x5xf32, #tpu.memory_space<vmem>>, vector<1x5xf32>
    %c0_3 = arith.constant 0 : index
    %3 = memref.load %arg2[%c0_3] : memref<4xf32, #tpu.memory_space<smem>>
    %c0_4 = arith.constant 0 : index
    %4 = memref.load %arg3[%c0_4] : memref<4xf32, #tpu.memory_space<smem>>
    %5 = arith.addf %3, %4 : f32
    %c0_5 = arith.constant 0 : index
    %c0_6 = arith.constant 0 : index
    %6 = memref.load %arg1[%c0_5, %c0_6] : memref<3x4xf32, #tpu.memory_space<smem>>
    %7 = vector.broadcast %6 : f32 to vector<1x5xf32>
    %8 = arith.mulf %0, %7 : vector<1x5xf32>
    %c1_7 = arith.constant 1 : index
    %c0_8 = arith.constant 0 : index
    %9 = memref.load %arg1[%c1_7, %c0_8] : memref<3x4xf32, #tpu.memory_space<smem>>
    %10 = vector.broadcast %9 : f32 to vector<1x5xf32>
    %11 = arith.mulf %1, %10 : vector<1x5xf32>
    %12 = arith.addf %8, %11 : vector<1x5xf32>
    %c2_9 = arith.constant 2 : index
    %c0_10 = arith.constant 0 : index
    %13 = memref.load %arg1[%c2_9, %c0_10] : memref<3x4xf32, #tpu.memory_space<smem>>
    %14 = vector.broadcast %13 : f32 to vector<1x5xf32>
    %15 = arith.mulf %2, %14 : vector<1x5xf32>
    %16 = arith.addf %12, %15 : vector<1x5xf32>
    %17 = vector.broadcast %5 : f32 to vector<1x5xf32>
    %18 = arith.addf %16, %17 : vector<1x5xf32>
    %cst = arith.constant 0.000000e+00 : f32
    %19 = vector.broadcast %cst : f32 to vector<1x5xf32>
    %20 = arith.maximumf %18, %19 : vector<1x5xf32>
    %c0_11 = arith.constant 0 : index
    %c0_12 = arith.constant 0 : index
    %21 = vector.load %arg4[%c0_11, %c0_12] : memref<4x5xf32, #tpu.memory_space<vmem>>, vector<1x5xf32>
    tpu.vector_store %arg4[%c0_11, %c0_12], %20 {strides = array<i32>} : memref<4x5xf32, #tpu.memory_space<vmem>>, vector<1x5xf32>,
    %c1_13 = arith.constant 1 : index
    %22 = memref.load %arg2[%c1_13] : memref<4xf32, #tpu.memory_space<smem>>
    %c1_14 = arith.constant 1 : index
    %23 = memref.load %arg3[%c1_14] : memref<4xf32, #tpu.memory_space<smem>>
    %24 = arith.addf %22, %23 : f32
    %c0_15 = arith.constant 0 : index
    %c1_16 = arith.constant 1 : index
    %25 = memref.load %arg1[%c0_15, %c1_16] : memref<3x4xf32, #tpu.memory_space<smem>>
    %26 = vector.broadcast %25 : f32 to vector<1x5xf32>
    %27 = arith.mulf %0, %26 : vector<1x5xf32>
    %c1_17 = arith.constant 1 : index
    %c1_18 = arith.constant 1 : index
    %28 = memref.load %arg1[%c1_17, %c1_18] : memref<3x4xf32, #tpu.memory_space<smem>>
    %29 = vector.broadcast %28 : f32 to vector<1x5xf32>
    %30 = arith.mulf %1, %29 : vector<1x5xf32>
    %31 = arith.addf %27, %30 : vector<1x5xf32>
    %c2_19 = arith.constant 2 : index
    %c1_20 = arith.constant 1 : index
    %32 = memref.load %arg1[%c2_19, %c1_20] : memref<3x4xf32, #tpu.memory_space<smem>>
    %33 = vector.broadcast %32 : f32 to vector<1x5xf32>
    %34 = arith.mulf %2, %33 : vector<1x5xf32>
    %35 = arith.addf %31, %34 : vector<1x5xf32>
    %36 = vector.broadcast %24 : f32 to vector<1x5xf32>
    %37 = arith.addf %35, %36 : vector<1x5xf32>
    %cst_21 = arith.constant 0.000000e+00 : f32
    %38 = vector.broadcast %cst_21 : f32 to vector<1x5xf32>
    %39 = arith.maximumf %37, %38 : vector<1x5xf32>
    %c1_22 = arith.constant 1 : index
    %c0_23 = arith.constant 0 : index
    %40 = vector.load %arg4[%c1_22, %c0_23] : memref<4x5xf32, #tpu.memory_space<vmem>>, vector<1x5xf32>
    tpu.vector_store %arg4[%c1_22, %c0_23], %39 {strides = array<i32>} : memref<4x5xf32, #tpu.memory_space<vmem>>, vector<1x5xf32>,
    %c2_24 = arith.constant 2 : index
    %41 = memref.load %arg2[%c2_24] : memref<4xf32, #tpu.memory_space<smem>>
    %c2_25 = arith.constant 2 : index
    %42 = memref.load %arg3[%c2_25] : memref<4xf32, #tpu.memory_space<smem>>
    %43 = arith.addf %41, %42 : f32
    %c0_26 = arith.constant 0 : index
    %c2_27 = arith.constant 2 : index
    %44 = memref.load %arg1[%c0_26, %c2_27] : memref<3x4xf32, #tpu.memory_space<smem>>
    %45 = vector.broadcast %44 : f32 to vector<1x5xf32>
    %46 = arith.mulf %0, %45 : vector<1x5xf32>
    %c1_28 = arith.constant 1 : index
    %c2_29 = arith.constant 2 : index
    %47 = memref.load %arg1[%c1_28, %c2_29] : memref<3x4xf32, #tpu.memory_space<smem>>
    %48 = vector.broadcast %47 : f32 to vector<1x5xf32>
    %49 = arith.mulf %1, %48 : vector<1x5xf32>
    %50 = arith.addf %46, %49 : vector<1x5xf32>
    %c2_30 = arith.constant 2 : index
    %c2_31 = arith.constant 2 : index
    %51 = memref.load %arg1[%c2_30, %c2_31] : memref<3x4xf32, #tpu.memory_space<smem>>
    %52 = vector.broadcast %51 : f32 to vector<1x5xf32>
    %53 = arith.mulf %2, %52 : vector<1x5xf32>
    %54 = arith.addf %50, %53 : vector<1x5xf32>
    %55 = vector.broadcast %43 : f32 to vector<1x5xf32>
    %56 = arith.addf %54, %55 : vector<1x5xf32>
    %cst_32 = arith.constant 0.000000e+00 : f32
    %57 = vector.broadcast %cst_32 : f32 to vector<1x5xf32>
    %58 = arith.maximumf %56, %57 : vector<1x5xf32>
    %c2_33 = arith.constant 2 : index
    %c0_34 = arith.constant 0 : index
    %59 = vector.load %arg4[%c2_33, %c0_34] : memref<4x5xf32, #tpu.memory_space<vmem>>, vector<1x5xf32>
    tpu.vector_store %arg4[%c2_33, %c0_34], %58 {strides = array<i32>} : memref<4x5xf32, #tpu.memory_space<vmem>>, vector<1x5xf32>,
    %c3 = arith.constant 3 : index
    %60 = memref.load %arg2[%c3] : memref<4xf32, #tpu.memory_space<smem>>
    %c3_35 = arith.constant 3 : index
    %61 = memref.load %arg3[%c3_35] : memref<4xf32, #tpu.memory_space<smem>>
    %62 = arith.addf %60, %61 : f32
    %c0_36 = arith.constant 0 : index
    %c3_37 = arith.constant 3 : index
    %63 = memref.load %arg1[%c0_36, %c3_37] : memref<3x4xf32, #tpu.memory_space<smem>>
    %64 = vector.broadcast %63 : f32 to vector<1x5xf32>
    %65 = arith.mulf %0, %64 : vector<1x5xf32>
    %c1_38 = arith.constant 1 : index
    %c3_39 = arith.constant 3 : index
    %66 = memref.load %arg1[%c1_38, %c3_39] : memref<3x4xf32, #tpu.memory_space<smem>>
    %67 = vector.broadcast %66 : f32 to vector<1x5xf32>
    %68 = arith.mulf %1, %67 : vector<1x5xf32>
    %69 = arith.addf %65, %68 : vector<1x5xf32>
    %c2_40 = arith.constant 2 : index
    %c3_41 = arith.constant 3 : index
    %70 = memref.load %arg1[%c2_40, %c3_41] : memref<3x4xf32, #tpu.memory_space<smem>>
    %71 = vector.broadcast %70 : f32 to vector<1x5xf32>
    %72 = arith.mulf %2, %71 : vector<1x5xf32>
    %73 = arith.addf %69, %72 : vector<1x5xf32>
    %74 = vector.broadcast %62 : f32 to vector<1x5xf32>
    %75 = arith.addf %73, %74 : vector<1x5xf32>
    %cst_42 = arith.constant 0.000000e+00 : f32
    %76 = vector.broadcast %cst_42 : f32 to vector<1x5xf32>
    %77 = arith.maximumf %75, %76 : vector<1x5xf32>
    %c3_43 = arith.constant 3 : index
    %c0_44 = arith.constant 0 : index
    %78 = vector.load %arg4[%c3_43, %c0_44] : memref<4x5xf32, #tpu.memory_space<vmem>>, vector<1x5xf32>
    tpu.vector_store %arg4[%c3_43, %c0_44], %77 {strides = array<i32>} : memref<4x5xf32, #tpu.memory_space<vmem>>, vector<1x5xf32>,
    return
  }
}

</mosaic_0001>

<llo_original>
// kernel: tpu_custom_call.1
$region0: #{tpu_custom_call.1}
  #allocation0 [shape = 'u32[]', space=smem, size = 0x4, offset = 0x4, fixed_abs, tag = 'smem constant byte address 0x4 - core index']
  #allocation1 [shape = 'u32[144,128]{1,0:T(1,128)}', space=vmem, size = 0x12000, scoped, tag = 'internal scratch']
  %s0 = inlined_call_operand.hbm [shape: f32[3,5], index: 0, kind: input, shape index: {}]
  %s1 = inlined_call_operand.hbm [shape: f32[3,4], index: 1, kind: input, shape index: {}]
  %s2 = inlined_call_operand.vmem [shape: f32[4], index: 2, kind: input, shape index: {}]
  %s3 = inlined_call_operand.vmem [shape: f32[4], index: 3, kind: input, shape index: {}]
  %s4 = inlined_call_operand.hbm [shape: f32[4,5], index: 4, kind: output, shape index: {}]
  %s5 = sld [smem:[#allocation0]]
  $region42: #{tpu_custom_call.1} parent=0
    _
  %s7 = ssub.s32 1, %s5
  %s8 = scalar_select 0, %s7, %s5
  $region1: #{tpu_custom_call.1} parent=0
    #allocation2 [shape = 'u8[2048]{0}', space=vmem, size = 0x800, scoped, tag = 'input window, operand 0, single buffered']
    #allocation3 [shape = 's32[1]{0}', space=sflag, size = 0x4, scoped, tag = 'scoped memory for tpu_custom_call.1']
    #allocation4 [shape = 's32[1]{0}', space=sflag, size = 0x4, scoped, tag = 'scoped memory for tpu_custom_call.1']
    #allocation5 [shape = 's32[1]{0}', space=sflag, size = 0x4, scoped, tag = 'scoped memory for tpu_custom_call.1']
    #allocation6 [shape = 's32[1]{0}', space=sflag, size = 0x4, scoped, tag = 'scoped memory for tpu_custom_call.1']
    #allocation7 [shape = 'u8[2048]{0}', space=smem, size = 0x800, scoped, tag = 'input window, operand 1, single buffered']
    #allocation8 [shape = 'u8[512]{0}', space=smem, size = 0x200, scoped, tag = 'input window, operand 2, single buffered']
    #allocation9 [shape = 'u8[512]{0}', space=smem, size = 0x200, scoped, tag = 'input window, operand 3, single buffered']
    #allocation10 [shape = 's32[1]{0}', space=sflag, size = 0x4, scoped, tag = 'scoped memory for tpu_custom_call.1']
    #allocation11 [shape = 'u8[2048]{0}', space=vmem, size = 0x800, scoped, tag = 'output window, operand 0, single buffered']
    %9 = vsyncpa [#allocation3], 0
    %10 = vsyncpa [#allocation5], 0
    %11 = vsyncpa [#allocation6], 0
    %12 = vsyncpa [#allocation10], 0
    %13 = vsyncpa [#allocation4], 0
    // Predicated region
    $region2: #{tpu_custom_call.1} parent=1 // pred_check
      _
    $region3: #{tpu_custom_call.1} parent=1 // pred_check_branch
      %15 = sbr.rel (0) target = $region5
    $region4: #{tpu_custom_call.1} parent=1 // pred_region
      %s17 = ssub.s32 64, 64
      %18 = vsyncadd [#allocation3], %s17
      %s20 = sshll.u32 [#allocation2], 4
      %s21 = int_to_ptr.vmem [resolvable:$true] %s20
      %23 = dma.hbm_to_vmem [thread:$0]  %s0, 64, %s21, [#allocation3]
    $region5: #{tpu_custom_call.1} parent=1 // pred_fallthru
      _
    // Predicated region
    $region6: #{tpu_custom_call.1} parent=1 // pred_check
      _
    $region7: #{tpu_custom_call.1} parent=1 // pred_check_branch
      %25 = sbr.rel (0) target = $region9
    $region8: #{tpu_custom_call.1} parent=1 // pred_region
      %s27 = ssub.s32 64, 64
      %28 = vsyncadd [#allocation5], %s27
      %31 = dma.hbm_to_smem %s1, 64, [#allocation7], [#allocation5]
    $region9: #{tpu_custom_call.1} parent=1 // pred_fallthru
      _
    // Predicated region
    $region10: #{tpu_custom_call.1} parent=1 // pred_check
      _
    $region11: #{tpu_custom_call.1} parent=1 // pred_check_branch
      %33 = sbr.rel (0) target = $region13
    $region12: #{tpu_custom_call.1} parent=1 // pred_region
      %s35 = ssub.s32 16, 16
      %36 = vsyncadd [#allocation6], %s35
      %s38 = sshll.u32 %s2, 4
      %s39 = int_to_ptr.vmem [resolvable:$true] %s38
      %41 = dma.vmem_to_smem %s39, 16, [#allocation8], [#allocation6]
    $region13: #{tpu_custom_call.1} parent=1 // pred_fallthru
      _
    // Predicated region
    $region14: #{tpu_custom_call.1} parent=1 // pred_check
      _
    $region15: #{tpu_custom_call.1} parent=1 // pred_check_branch
      %43 = sbr.rel (0) target = $region17
    $region16: #{tpu_custom_call.1} parent=1 // pred_region
      %s45 = ssub.s32 16, 16
      %46 = vsyncadd [#allocation10], %s45
      %s48 = sshll.u32 %s3, 4
      %s49 = int_to_ptr.vmem [resolvable:$true] %s48
      %51 = dma.vmem_to_smem %s49, 16, [#allocation9], [#allocation10]
    $region17: #{tpu_custom_call.1} parent=1 // pred_fallthru
      _
    // Predicated region
    $region18: #{tpu_custom_call.1} parent=1 // pred_check
      _
    $region19: #{tpu_custom_call.1} parent=1 // pred_check_branch
      %53 = sbr.rel (0) target = $region21
    $region20: #{tpu_custom_call.1} parent=1 // pred_region
      %54 = dma.done [#allocation3], 64
    $region21: #{tpu_custom_call.1} parent=1 // pred_fallthru
      _
    // Predicated region
    $region22: #{tpu_custom_call.1} parent=1 // pred_check
      _
    $region23: #{tpu_custom_call.1} parent=1 // pred_check_branch
      %56 = sbr.rel (0) target = $region25
    $region24: #{tpu_custom_call.1} parent=1 // pred_region
      %57 = dma.done [#allocation5], 64
    $region25: #{tpu_custom_call.1} parent=1 // pred_fallthru
      _
    // Predicated region
    $region26: #{tpu_custom_call.1} parent=1 // pred_check
      _
    $region27: #{tpu_custom_call.1} parent=1 // pred_check_branch
      %59 = sbr.rel (0) target = $region29
    $region28: #{tpu_custom_call.1} parent=1 // pred_region
      %60 = dma.done [#allocation6], 16
    $region29: #{tpu_custom_call.1} parent=1 // pred_fallthru
      _
    // Predicated region
    $region30: #{tpu_custom_call.1} parent=1 // pred_check
      _
    $region31: #{tpu_custom_call.1} parent=1 // pred_check_branch
      %62 = sbr.rel (0) target = $region33
    $region32: #{tpu_custom_call.1} parent=1 // pred_region
      %63 = dma.done [#allocation10], 16
    $region33: #{tpu_custom_call.1} parent=1 // pred_fallthru
      _
    %64 = sfence
    %v65 = vld [vmem:[#allocation2] sm:$0x1]
    %v66 = vld [vmem:[#allocation2 + $0x1] sm:$0x1]
    %v67 = vld [vmem:[#allocation2 + $0x2] sm:$0x1]
    %s68 = sld [smem:[#allocation8]]
    %s69 = sld [smem:[#allocation9]]
    %s70 = sadd.f32 %s68, %s69
    %s71 = sld [smem:[#allocation7]]
    %v72 = vstv %s71
    %v73 = vmul.f32 %v65, %v72
    %s74 = sld [smem:[#allocation7 + $0x80]]
    %v75 = vstv %s74
    %v76 = vmul.f32 %v66, %v75
    %v77 = vadd.f32 %v73, %v76
    %s78 = sld [smem:[#allocation7 + $0x100]]
    %v79 = vstv %s78
    %v80 = vmul.f32 %v67, %v79
    %v81 = vadd.f32 %v77, %v80
    %v82 = vstv %s70
    %v83 = vadd.f32 %v81, %v82
    %v84 = vmax.f32 %v83, 0.0
    %vm85 = vcmask 32768
    %86 = vst.msk [vmem:[#allocation11] sm:$0x1] %vm85, %v84
    %s87 = sld [smem:[#allocation8 + $0x1]]
    %s88 = sld [smem:[#allocation9 + $0x1]]
    %s89 = sadd.f32 %s87, %s88
    %s90 = sld [smem:[#allocation7 + $0x1]]
    %v91 = vstv %s90
    %v92 = vmul.f32 %v65, %v91
    %s93 = sld [smem:[#allocation7 + $0x81]]
    %v94 = vstv %s93
    %v95 = vmul.f32 %v66, %v94
    %v96 = vadd.f32 %v92, %v95
    %s97 = sld [smem:[#allocation7 + $0x101]]
    %v98 = vstv %s97
    %v99 = vmul.f32 %v67, %v98
    %v100 = vadd.f32 %v96, %v99
    %v101 = vstv %s89
    %v102 = vadd.f32 %v100, %v101
    %v103 = vmax.f32 %v102, 0.0
    %104 = vst.msk [vmem:[#allocation11 + $0x1] sm:$0x1] %vm85, %v103
    %s105 = sld [smem:[#allocation8 + $0x2]]
    %s106 = sld [smem:[#allocation9 + $0x2]]
    %s107 = sadd.f32 %s105, %s106
    %s108 = sld [smem:[#allocation7 + $0x2]]
    %v109 = vstv %s108
    %v110 = vmul.f32 %v65, %v109
    %s111 = sld [smem:[#allocation7 + $0x82]]
    %v112 = vstv %s111
    %v113 = vmul.f32 %v66, %v112
    %v114 = vadd.f32 %v110, %v113
    %s115 = sld [smem:[#allocation7 + $0x102]]
    %v116 = vstv %s115
    %v117 = vmul.f32 %v67, %v116
    %v118 = vadd.f32 %v114, %v117
    %v119 = vstv %s107
    %v120 = vadd.f32 %v118, %v119
    %v121 = vmax.f32 %v120, 0.0
    %122 = vst.msk [vmem:[#allocation11 + $0x2] sm:$0x1] %vm85, %v121
    %s123 = sld [smem:[#allocation8 + $0x3]]
    %s124 = sld [smem:[#allocation9 + $0x3]]
    %s125 = sadd.f32 %s123, %s124
    %s126 = sld [smem:[#allocation7 + $0x3]]
    %v127 = vstv %s126
    %v128 = vmul.f32 %v65, %v127
    %s129 = sld [smem:[#allocation7 + $0x83]]
    %v130 = vstv %s129
    %v131 = vmul.f32 %v66, %v130
    %v132 = vadd.f32 %v128, %v131
    %s133 = sld [smem:[#allocation7 + $0x103]]
    %v134 = vstv %s133
    %v135 = vmul.f32 %v67, %v134
    %v136 = vadd.f32 %v132, %v135
    %v137 = vstv %s125
    %v138 = vadd.f32 %v136, %v137
    %v139 = vmax.f32 %v138, 0.0
    %140 = vst.msk [vmem:[#allocation11 + $0x3] sm:$0x1] %vm85, %v139
    // Predicated region
    $region34: #{tpu_custom_call.1} parent=1 // pred_check
      _
    $region35: #{tpu_custom_call.1} parent=1 // pred_check_branch
      %142 = sbr.rel (0) target = $region37
    $region36: #{tpu_custom_call.1} parent=1 // pred_region
      %s144 = ssub.s32 64, 64
      %145 = vsyncadd [#allocation4], %s144
      %s147 = sshll.u32 [#allocation11], 4
      %s148 = int_to_ptr.vmem [resolvable:$true] %s147
      %150 = dma.vmem_to_hbm [thread:$0]  %s148, 64, %s4, [#allocation4]
    $region37: #{tpu_custom_call.1} parent=1 // pred_fallthru
      _
    // Predicated region
    $region38: #{tpu_custom_call.1} parent=1 // pred_check
      _
    $region39: #{tpu_custom_call.1} parent=1 // pred_check_branch
      %152 = sbr.rel (0) target = $region41
    $region40: #{tpu_custom_call.1} parent=1 // pred_region
      %153 = dma.done [#allocation4], 64
    $region41: #{tpu_custom_call.1} parent=1 // pred_fallthru
      _
    %154 = vsyncpa [#allocation3], 1
    %155 = vsyncpa [#allocation4], 1
    %156 = vsyncpa [#allocation5], 1
    %157 = vsyncpa [#allocation6], 1
    %158 = vsyncpa [#allocation10], 1

</llo_original>
